<compile_context>
chip_gen: v7x
topology: tpu7x:2x2x1
jax: 0.10.0
libtpu: 0.0.40
codegen_flags: <defaults>
</compile_context>

<pallas_src>
import functools

import jax
import jax.numpy as jnp
from jax import lax
from jax.experimental import pallas as pl
from jax.experimental.pallas import tpu as pltpu


def _round_up(x, m):
    return (x + m - 1) // m * m


def _choose_tiles(B):
    """Returns (Bp, TM, TN): padded batch size and row/col tile sizes."""
    if B <= 512:
        Bp = _round_up(B, 8)
        return Bp, Bp, Bp                     # single block, minimal padding
    Bp = _round_up(B, 256)                    # pad to 256 (less wasted B^2 work)
    TM = 256
    TN = 512 if Bp % 512 == 0 else 256        # larger col tile only if free
    return Bp, TM, TN


def _scl_tile(xr_ref, xc_ref, lr_ref, lc_ref, sr_ref, sc_ref, out_ref,
              xrn_ref, denom_acc, msum_acc, mlog_acc, colsum_acc, q_acc,
              *, inv_temp, pad_cols, pseudo_weight, use_bf16):
    j = pl.program_id(1)
    has_soft = sr_ref is not None

    # Column tile cosine normalization (eps clamp like F.cosine_similarity).
    xc = xc_ref[...].astype(jnp.float32)                              # [TN, D]
    xcn = xc / jnp.maximum(jnp.sqrt(jnp.sum(xc * xc, axis=-1, keepdims=True)), 1e-8)

    @pl.when(j == 0)
    def _init():
        # Normalize the row tile once per row block and cache it in VMEM.
        xr = xr_ref[...].astype(jnp.float32)                          # [TM, D]
        xrn = xr / jnp.maximum(jnp.sqrt(jnp.sum(xr * xr, axis=-1, keepdims=True)),
                               1e-8)
        xrn_ref[...] = xrn
        # Diagonal corrections applied once per row block:
        #   denominator excludes j == i        -> subtract e_ii
        #   hard mask zeroes the diagonal      -> subtract 1 and logits_ii
        # Zero-padded columns contribute exp(0) = 1 each -> subtract pad_cols.
        diag_logit = jnp.sum(xrn * xrn, axis=-1, keepdims=True) * inv_temp
        denom_acc[...] = -jnp.exp(diag_logit) - float(pad_cols)
        msum_acc[...] = jnp.full(msum_acc.shape, -1.0, dtype=jnp.float32)
        mlog_acc[...] = -diag_logit
        if has_soft:
            colsum_acc[...] = jnp.zeros_like(colsum_acc)
            q_acc[...] = jnp.zeros_like(q_acc)

    md = jnp.bfloat16 if use_bf16 else jnp.float32
    xrn = xrn_ref[...]                                                 # cached [TM, D]
    sim = lax.dot_general(xrn.astype(md), xcn.astype(md),
                          (((1,), (1,)), ((), ())),
                          preferred_element_type=jnp.float32)          # [TM, TN]
    logits = sim * inv_temp
    e = jnp.exp(logits)                                                # one exp per element

    eq = (lr_ref[...] == lc_ref[...]).astype(jnp.float32)              # [TM, TN]

    denom_acc[...] += jnp.sum(e, axis=-1, keepdims=True)
    msum_acc[...] += jnp.sum(eq, axis=-1, keepdims=True)
    mlog_acc[...] += jnp.sum(eq * logits, axis=-1, keepdims=True)

    if has_soft:
        sc = sc_ref[...].astype(jnp.float32)                           # [TN, C]
        colsum_acc[...] += jnp.sum(sc, axis=0, keepdims=True)          # [1, C]
        # Q[m, c] += sum_n logits[m, n] * S[n, c]   (no [TM, TN] soft-sim tile)
        q_acc[...] += lax.dot_general(logits, sc, (((1,), (0,)), ((), ())),
                                      preferred_element_type=jnp.float32)

    @pl.when(j == pl.num_programs(1) - 1)
    def _finalize():
        msum = msum_acc[...]
        mlog = mlog_acc[...]
        if has_soft:
            sr = sr_ref[...].astype(jnp.float32)                       # [TM, C]
            # sum_j (S S^T)_ij            = s_i . colsum(S)
            # sum_j (S S^T)_ij * logit_ij = s_i . Q_i
            msum = msum + pseudo_weight * jnp.sum(sr * colsum_acc[...],
                                                  axis=-1, keepdims=True)
            mlog = mlog + pseudo_weight * jnp.sum(sr * q_acc[...],
                                                  axis=-1, keepdims=True)
        # per-row loss_i = sum_j mask_ij * (log(denom_i) - logits_ij)
        out_ref[...] = msum * jnp.log(denom_acc[...]) - mlog


def _make_kernel(has_soft, inv_temp, pad_cols, pseudo_weight, use_bf16):
    def kernel(*refs):
        if has_soft:
            (xr, xc, lr, lc, sr, sc, out,
             xrn_s, d_acc, m_acc, g_acc, cs_acc, q_acc) = refs
        else:
            xr, xc, lr, lc, out, xrn_s, d_acc, m_acc, g_acc = refs
            sr = sc = cs_acc = q_acc = None
        _scl_tile(xr, xc, lr, lc, sr, sc, out,
                  xrn_s, d_acc, m_acc, g_acc, cs_acc, q_acc,
                  inv_temp=inv_temp, pad_cols=pad_cols,
                  pseudo_weight=pseudo_weight, use_bf16=use_bf16)
    return kernel


def supervised_contrastive_loss(representations, labels, soft_labels=None,
                                pseudo_weight=10.0, temperature=0.1,
                                use_bf16_matmul=False):
    """Pallas TPU SupervisedContrastiveLoss.forward.

    use_bf16_matmul=True casts the Gram-matrix operands to bf16 (f32 accum):
    ~2-4x MXU throughput on v6e/v7x at ~1e-3..1e-2 relative accuracy cost.
    """
    x = jnp.asarray(representations, jnp.float32)
    B, D = x.shape
    lab = jnp.asarray(labels, jnp.int32).reshape(B)

    Bp, TM, TN = _choose_tiles(B)
    Dp = max(_round_up(D, 128), 128)          # pad contraction dim for the MXU
    pad_rows = Bp - B

    # Zero rows normalize to zero vectors => their similarity is exactly 0 and
    # exp(0) = 1, which is removed by the static `pad_cols` correction in-kernel.
    xp = jnp.pad(x, ((0, pad_rows), (0, Dp - D)))
    if pad_rows:
        sentinel = jnp.min(lab) - 1           # never equal to a real label
        lab = jnp.concatenate(
            [lab, jnp.broadcast_to(sentinel, (pad_rows,)).astype(jnp.int32)])
    lab_row = lab.reshape(Bp, 1)
    # TODO(synk): row labels are a [Bp,1] block (lane-padded in VMEM); kept for
    # lowering robustness instead of an in-kernel [1,TM]->[TM,1] relayout.
    lab_col = lab.reshape(1, Bp)              # lane-dense column labels

    grid = (Bp // TM, Bp // TN)
    has_soft = soft_labels is not None

    in_specs = [
        pl.BlockSpec((TM, Dp), lambda i, j: (i, 0)),   # x row tile (resident over j)
        pl.BlockSpec((TN, Dp), lambda i, j: (j, 0)),   # x col tile (double-buffered)
        pl.BlockSpec((TM, 1), lambda i, j: (i, 0)),    # row labels
        pl.BlockSpec((1, TN), lambda i, j: (0, j)),    # col labels (lane-dense)
    ]
    args = [xp, xp, lab_row, lab_col]
    scratch = [pltpu.VMEM((TM, Dp), jnp.float32),      # cached normalized row tile
               pltpu.VMEM((TM, 1), jnp.float32),       # denominator accumulator
               pltpu.VMEM((TM, 1), jnp.float32),       # mask row-sum accumulator
               pltpu.VMEM((TM, 1), jnp.float32)]       # masked-logit accumulator

    flops = 2 * Bp * Bp * Dp
    if has_soft:
        s = jnp.asarray(soft_labels, jnp.float32)
        C = s.shape[1]
        sp = jnp.pad(s, ((0, pad_rows), (0, 0)))       # zero rows: no contribution
        in_specs += [pl.BlockSpec((TM, C), lambda i, j: (i, 0)),
                     pl.BlockSpec((TN, C), lambda i, j: (j, 0))]
        args += [sp, sp]
        scratch += [pltpu.VMEM((1, C), jnp.float32),   # running colsum(S)
                    pltpu.VMEM((TM, C), jnp.float32)]  # running logits @ S
        flops += 2 * Bp * Bp * C + 4 * Bp * C

    kernel = _make_kernel(has_soft, float(1.0 / temperature), int(pad_rows),
                          float(pseudo_weight), bool(use_bf16_matmul))

    per_row = pl.pallas_call(
        kernel,
        out_shape=jax.ShapeDtypeStruct((Bp, 1), jnp.float32),
        grid_spec=pltpu.PrefetchScalarGridSpec(
            num_scalar_prefetch=0,
            grid=grid,
            in_specs=in_specs,
            out_specs=pl.BlockSpec((TM, 1), lambda i, j: (i, 0)),
            scratch_shapes=scratch),
        compiler_params=pltpu.CompilerParams(
            dimension_semantics=("parallel", "arbitrary"),
            vmem_limit_bytes=32 * 1024 * 1024),
        cost_estimate=pl.CostEstimate(
            flops=int(flops),
            transcendentals=int(Bp * Bp + Bp),
            bytes_accessed=int(4 * Bp * Dp * (grid[0] + grid[1]) + 12 * Bp)),
    )(*args)

    # Tiny final reduction over the per-row partials (kept outside so the
    # row-block axis can stay megacore-parallel without a racy scalar output).
    return jnp.sum(per_row[:B, 0]) / B


def _reference(x, labels, soft_labels=None, pseudo_weight=10.0, temperature=0.1):
    """Vectorized pure-JAX mirror of the PyTorch loop, for verification."""
    B = x.shape[0]
    xn = x / jnp.maximum(jnp.linalg.norm(x, axis=-1, keepdims=True), 1e-8)
    sim = jnp.matmul(xn, xn.T, precision=lax.Precision.HIGHEST)
    logits = sim / temperature
    e = jnp.exp(logits)
    off = 1.0 - jnp.eye(B, dtype=jnp.float32)
    denom = jnp.sum(e * off, axis=-1, keepdims=True)
    loss_arr = jnp.log(denom) - logits
    mask = (labels[:, None] == labels[None, :]).astype(jnp.float32) * off
    if soft_labels is not None:
        soft_sim = jnp.matmul(soft_labels, soft_labels.T,
                              precision=lax.Precision.HIGHEST)
        mask = mask + pseudo_weight * soft_sim   # diagonal intentionally kept
    return jnp.sum(loss_arr * mask) / B


if __name__ == "__main__":
    key = jax.random.PRNGKey(0)
    k1, k2, k3, k4, k5, k6 = jax.random.split(key, 6)

    # --- small shapes (single-tile path) ---
    B, D, C = 8, 32, 4
    x = jax.random.normal(k1, (B, D), dtype=jnp.float32)
    labels = jax.random.randint(k2, (B,), 0, 3, dtype=jnp.int32)
    soft = jax.nn.softmax(jax.random.normal(k3, (B, C), dtype=jnp.float32), axis=-1)

    out_hard = jax.block_until_ready(supervised_contrastive_loss(x, labels))
    out_soft = jax.block_until_ready(
        supervised_contrastive_loss(x, labels, soft, pseudo_weight=10.0))
    ref_hard = _reference(x, labels)
    ref_soft = _reference(x, labels, soft, pseudo_weight=10.0)
    assert jnp.allclose(out_hard, ref_hard, rtol=1e-3, atol=1e-3), (out_hard, ref_hard)
    assert jnp.allclose(out_soft, ref_soft, rtol=1e-3, atol=1e-3), (out_soft, ref_soft)

    # --- larger shapes: exercises the tiled, padded, multi-block path ---
    B2, D2, C2 = 640, 40, 5
    x2 = jax.random.normal(k4, (B2, D2), dtype=jnp.float32)
    labels2 = jax.random.randint(k5, (B2,), 0, 7, dtype=jnp.int32)
    soft2 = jax.nn.softmax(jax.random.normal(k6, (B2, C2), dtype=jnp.float32), axis=-1)

    out2_hard = jax.block_until_ready(supervised_contrastive_loss(x2, labels2))
    out2_soft = jax.block_until_ready(
        supervised_contrastive_loss(x2, labels2, soft2, pseudo_weight=10.0))
    ref2_hard = _reference(x2, labels2)
    ref2_soft = _reference(x2, labels2, soft2, pseudo_weight=10.0)
    assert jnp.allclose(out2_hard, ref2_hard, rtol=1e-3, atol=1e-2), (out2_hard, ref2_hard)
    assert jnp.allclose(out2_soft, ref2_soft, rtol=1e-3, atol=1e-2), (out2_soft, ref2_soft)

    # --- bf16 MXU operands (v6e/v7x fast path), f32 accumulation ---
    out2_bf16 = jax.block_until_ready(
        supervised_contrastive_loss(x2, labels2, soft2, pseudo_weight=10.0,
                                    use_bf16_matmul=True))
    assert jnp.allclose(out2_bf16, ref2_soft, rtol=3e-2, atol=3e-2), (out2_bf16, ref2_soft)

    print("KERNEL_OK")
</pallas_src>

<mosaic_0001>
module attributes {stable_mosaic.version = 11 : i64} {
  func.func @kernel(%arg0: i32, %arg1: i32, %arg2: memref<8x128xf32, #tpu.memory_space<vmem>>, %arg3: memref<8x128xf32, #tpu.memory_space<vmem>>, %arg4: memref<8x1xi32, #tpu.memory_space<vmem>>, %arg5: memref<1x8xi32, #tpu.memory_space<vmem>>, %arg6: memref<8x1xf32, #tpu.memory_space<vmem>>, %arg7: memref<8x128xf32, #tpu.memory_space<vmem>>, %arg8: memref<8x1xf32, #tpu.memory_space<vmem>>, %arg9: memref<8x1xf32, #tpu.memory_space<vmem>>, %arg10: memref<8x1xf32, #tpu.memory_space<vmem>>) attributes {dimension_semantics = [#tpu.dimension_semantics<parallel>, #tpu.dimension_semantics<arbitrary>], iteration_bounds = array<i64: 1, 1>, scalar_prefetch = 0 : i64, scratch_operands = 4 : i64, tpu.core_type = #tpu.core_type<tc>, window_params = [{transform_indices = @transform_0, window_bounds = array<i64: 8, 128>}, {transform_indices = @transform_1, window_bounds = array<i64: 8, 128>}, {transform_indices = @transform_2, window_bounds = array<i64: 8, 1>}, {transform_indices = @transform_3, window_bounds = array<i64: 1, 8>}, {transform_indices = @transform_4, window_bounds = array<i64: 8, 1>}]} {
    %c0 = arith.constant 0 : index
    %c0_0 = arith.constant 0 : index
    %0 = vector.load %arg3[%c0, %c0_0] : memref<8x128xf32, #tpu.memory_space<vmem>>, vector<8x128xf32>
    %1 = arith.mulf %0, %0 : vector<8x128xf32>
    %cst = arith.constant dense<0.000000e+00> : vector<8xf32>
    %2 = vector.multi_reduction <add>, %1, %cst [1] : vector<8x128xf32> to vector<8xf32>
    %3 = vector.shape_cast %2 : vector<8xf32> to vector<8x1xf32>
    %4 = math.sqrt %3 : vector<8x1xf32>
    %cst_1 = arith.constant 9.99999993E-9 : f32
    %5 = vector.broadcast %cst_1 : f32 to vector<8x1xf32>
    %6 = arith.maximumf %4, %5 : vector<8x1xf32>
    %7 = vector.broadcast %6 : vector<8x1xf32> to vector<8x128xf32>
    %8 = arith.divf %0, %7 : vector<8x128xf32>
    %c0_i32 = arith.constant 0 : i32
    %9 = arith.cmpi eq, %arg1, %c0_i32 : i32
    %10 = arith.extui %9 : i1 to i32
    %c0_i32_2 = arith.constant 0 : i32
    %11 = arith.cmpi ne, %10, %c0_i32_2 : i32
    scf.if %11 {
      %c0_28 = arith.constant 0 : index
      %c0_29 = arith.constant 0 : index
      %43 = vector.load %arg2[%c0_28, %c0_29] : memref<8x128xf32, #tpu.memory_space<vmem>>, vector<8x128xf32>
      %44 = arith.mulf %43, %43 : vector<8x128xf32>
      %cst_30 = arith.constant dense<0.000000e+00> : vector<8xf32>
      %45 = vector.multi_reduction <add>, %44, %cst_30 [1] : vector<8x128xf32> to vector<8xf32>
      %46 = vector.shape_cast %45 : vector<8xf32> to vector<8x1xf32>
      %47 = math.sqrt %46 : vector<8x1xf32>
      %cst_31 = arith.constant 9.99999993E-9 : f32
      %48 = vector.broadcast %cst_31 : f32 to vector<8x1xf32>
      %49 = arith.maximumf %47, %48 : vector<8x1xf32>
      %50 = vector.broadcast %49 : vector<8x1xf32> to vector<8x128xf32>
      %51 = arith.divf %43, %50 : vector<8x128xf32>
      %c0_32 = arith.constant 0 : index
      %c0_33 = arith.constant 0 : index
      %52 = vector.load %arg7[%c0_32, %c0_33] : memref<8x128xf32, #tpu.memory_space<vmem>>, vector<8x128xf32>
      tpu.vector_store %arg7[%c0_32, %c0_33], %51 {strides = array<i32>} : memref<8x128xf32, #tpu.memory_space<vmem>>, vector<8x128xf32>,
      %53 = arith.mulf %51, %51 : vector<8x128xf32>
      %cst_34 = arith.constant dense<0.000000e+00> : vector<8xf32>
      %54 = vector.multi_reduction <add>, %53, %cst_34 [1] : vector<8x128xf32> to vector<8xf32>
      %55 = vector.shape_cast %54 : vector<8xf32> to vector<8x1xf32>
      %cst_35 = arith.constant 1.000000e+01 : f32
      %56 = vector.broadcast %cst_35 : f32 to vector<8x1xf32>
      %57 = arith.mulf %55, %56 : vector<8x1xf32>
      %58 = math.exp %57 : vector<8x1xf32>
      %cst_36 = arith.constant 0.000000e+00 : f32
      %59 = vector.broadcast %cst_36 : f32 to vector<8x1xf32>
      %60 = arith.subf %59, %58 : vector<8x1xf32>
      %cst_37 = arith.constant 0.000000e+00 : f32
      %61 = vector.broadcast %cst_37 : f32 to vector<8x1xf32>
      %62 = arith.subf %60, %61 : vector<8x1xf32>
      %c0_38 = arith.constant 0 : index
      %c0_39 = arith.constant 0 : index
      %63 = vector.load %arg8[%c0_38, %c0_39] : memref<8x1xf32, #tpu.memory_space<vmem>>, vector<8x1xf32>
      tpu.vector_store %arg8[%c0_38, %c0_39], %62 {strides = array<i32>} : memref<8x1xf32, #tpu.memory_space<vmem>>, vector<8x1xf32>,
      %cst_40 = arith.constant -1.000000e+00 : f32
      %64 = vector.broadcast %cst_40 : f32 to vector<8x1xf32>
      %c0_41 = arith.constant 0 : index
      %c0_42 = arith.constant 0 : index
      %65 = vector.load %arg9[%c0_41, %c0_42] : memref<8x1xf32, #tpu.memory_space<vmem>>, vector<8x1xf32>
      tpu.vector_store %arg9[%c0_41, %c0_42], %64 {strides = array<i32>} : memref<8x1xf32, #tpu.memory_space<vmem>>, vector<8x1xf32>,
      %cst_43 = arith.constant 0.000000e+00 : f32
      %66 = vector.broadcast %cst_43 : f32 to vector<8x1xf32>
      %67 = arith.subf %66, %57 : vector<8x1xf32>
      %c0_44 = arith.constant 0 : index
      %c0_45 = arith.constant 0 : index
      %68 = vector.load %arg10[%c0_44, %c0_45] : memref<8x1xf32, #tpu.memory_space<vmem>>, vector<8x1xf32>
      tpu.vector_store %arg10[%c0_44, %c0_45], %67 {strides = array<i32>} : memref<8x1xf32, #tpu.memory_space<vmem>>, vector<8x1xf32>,
    } else {
    }
    %c0_3 = arith.constant 0 : index
    %c0_4 = arith.constant 0 : index
    %12 = vector.load %arg7[%c0_3, %c0_4] : memref<8x128xf32, #tpu.memory_space<vmem>>, vector<8x128xf32>
    %cst_5 = arith.constant dense<0.000000e+00> : vector<8x8xf32>
    %13 = tpu.matmul %12, %8, %cst_5 {dimension_numbers = #tpu.dot_dimension_numbers<[1], [1], [0], [0], [0, 0, 1, 0], [], []>} : vector<8x128xf32>, vector<8x128xf32>, vector<8x8xf32> -> vector<8x8xf32>
    %cst_6 = arith.constant 1.000000e+01 : f32
    %14 = vector.broadcast %cst_6 : f32 to vector<8x8xf32>
    %15 = arith.mulf %13, %14 : vector<8x8xf32>
    %16 = math.exp %15 : vector<8x8xf32>
    %c0_7 = arith.constant 0 : index
    %c0_8 = arith.constant 0 : index
    %17 = vector.load %arg4[%c0_7, %c0_8] : memref<8x1xi32, #tpu.memory_space<vmem>>, vector<8x1xi32>
    %c0_9 = arith.constant 0 : index
    %c0_10 = arith.constant 0 : index
    %18 = vector.load %arg5[%c0_9, %c0_10] : memref<1x8xi32, #tpu.memory_space<vmem>>, vector<1x8xi32>
    %19 = vector.broadcast %17 : vector<8x1xi32> to vector<8x8xi32>
    %20 = vector.broadcast %18 : vector<1x8xi32> to vector<8x8xi32>
    %21 = arith.cmpi eq, %19, %20 : vector<8x8xi32>
    %22 = arith.extui %21 : vector<8x8xi1> to vector<8x8xi32>
    %23 = arith.sitofp %22 : vector<8x8xi32> to vector<8x8xf32>
    %c0_11 = arith.constant 0 : index
    %c0_12 = arith.constant 0 : index
    %24 = vector.load %arg8[%c0_11, %c0_12] : memref<8x1xf32, #tpu.memory_space<vmem>>, vector<8x1xf32>
    %cst_13 = arith.constant dense<0.000000e+00> : vector<8xf32>
    %25 = vector.multi_reduction <add>, %16, %cst_13 [1] : vector<8x8xf32> to vector<8xf32>
    %26 = vector.shape_cast %25 : vector<8xf32> to vector<8x1xf32>
    %27 = arith.addf %24, %26 : vector<8x1xf32>
    %c0_14 = arith.constant 0 : index
    %c0_15 = arith.constant 0 : index
    %28 = vector.load %arg8[%c0_14, %c0_15] : memref<8x1xf32, #tpu.memory_space<vmem>>, vector<8x1xf32>
    tpu.vector_store %arg8[%c0_14, %c0_15], %27 {strides = array<i32>} : memref<8x1xf32, #tpu.memory_space<vmem>>, vector<8x1xf32>,
    %c0_16 = arith.constant 0 : index
    %c0_17 = arith.constant 0 : index
    %29 = vector.load %arg9[%c0_16, %c0_17] : memref<8x1xf32, #tpu.memory_space<vmem>>, vector<8x1xf32>
    %cst_18 = arith.constant dense<0.000000e+00> : vector<8xf32>
    %30 = vector.multi_reduction <add>, %23, %cst_18 [1] : vector<8x8xf32> to vector<8xf32>
    %31 = vector.shape_cast %30 : vector<8xf32> to vector<8x1xf32>
    %32 = arith.addf %29, %31 : vector<8x1xf32>
    %c0_19 = arith.constant 0 : index
    %c0_20 = arith.constant 0 : index
    %33 = vector.load %arg9[%c0_19, %c0_20] : memref<8x1xf32, #tpu.memory_space<vmem>>, vector<8x1xf32>
    tpu.vector_store %arg9[%c0_19, %c0_20], %32 {strides = array<i32>} : memref<8x1xf32, #tpu.memory_space<vmem>>, vector<8x1xf32>,
    %c0_21 = arith.constant 0 : index
    %c0_22 = arith.constant 0 : index
    %34 = vector.load %arg10[%c0_21, %c0_22] : memref<8x1xf32, #tpu.memory_space<vmem>>, vector<8x1xf32>
    %35 = arith.mulf %23, %15 : vector<8x8xf32>
    %cst_23 = arith.constant dense<0.000000e+00> : vector<8xf32>
    %36 = vector.multi_reduction <add>, %35, %cst_23 [1] : vector<8x8xf32> to vector<8xf32>
    %37 = vector.shape_cast %36 : vector<8xf32> to vector<8x1xf32>
    %38 = arith.addf %34, %37 : vector<8x1xf32>
    %c0_24 = arith.constant 0 : index
    %c0_25 = arith.constant 0 : index
    %39 = vector.load %arg10[%c0_24, %c0_25] : memref<8x1xf32, #tpu.memory_space<vmem>>, vector<8x1xf32>
    tpu.vector_store %arg10[%c0_24, %c0_25], %38 {strides = array<i32>} : memref<8x1xf32, #tpu.memory_space<vmem>>, vector<8x1xf32>,
    %c0_i32_26 = arith.constant 0 : i32
    %40 = arith.cmpi eq, %arg1, %c0_i32_26 : i32
    %41 = arith.extui %40 : i1 to i32
    %c0_i32_27 = arith.constant 0 : i32
    %42 = arith.cmpi ne, %41, %c0_i32_27 : i32
    scf.if %42 {
      %c0_28 = arith.constant 0 : index
      %c0_29 = arith.constant 0 : index
      %43 = vector.load %arg9[%c0_28, %c0_29] : memref<8x1xf32, #tpu.memory_space<vmem>>, vector<8x1xf32>
      %c0_30 = arith.constant 0 : index
      %c0_31 = arith.constant 0 : index
      %44 = vector.load %arg10[%c0_30, %c0_31] : memref<8x1xf32, #tpu.memory_space<vmem>>, vector<8x1xf32>
      %c0_32 = arith.constant 0 : index
      %c0_33 = arith.constant 0 : index
      %45 = vector.load %arg8[%c0_32, %c0_33] : memref<8x1xf32, #tpu.memory_space<vmem>>, vector<8x1xf32>
      %46 = math.log %45 : vector<8x1xf32>
      %47 = arith.mulf %43, %46 : vector<8x1xf32>
      %48 = arith.subf %47, %44 : vector<8x1xf32>
      %c0_34 = arith.constant 0 : index
      %c0_35 = arith.constant 0 : index
      %49 = vector.load %arg6[%c0_34, %c0_35] : memref<8x1xf32, #tpu.memory_space<vmem>>, vector<8x1xf32>
      tpu.vector_store %arg6[%c0_34, %c0_35], %48 {strides = array<i32>} : memref<8x1xf32, #tpu.memory_space<vmem>>, vector<8x1xf32>,
    } else {
    }
    return
  }
  func.func @transform_0(%arg0: i32, %arg1: i32) -> (i32, i32) {
    %c0_i32 = arith.constant 0 : i32
    %c0_i32_0 = arith.constant 0 : i32
    return %arg0, %c0_i32 : i32, i32
  }
  func.func @transform_1(%arg0: i32, %arg1: i32) -> (i32, i32) {
    %c0_i32 = arith.constant 0 : i32
    %c0_i32_0 = arith.constant 0 : i32
    return %arg1, %c0_i32 : i32, i32
  }
  func.func @transform_2(%arg0: i32, %arg1: i32) -> (i32, i32) {
    %c0_i32 = arith.constant 0 : i32
    %c0_i32_0 = arith.constant 0 : i32
    return %arg0, %c0_i32 : i32, i32
  }
  func.func @transform_3(%arg0: i32, %arg1: i32) -> (i32, i32) {
    %c0_i32 = arith.constant 0 : i32
    %c0_i32_0 = arith.constant 0 : i32
    return %c0_i32, %arg1 : i32, i32
  }
  func.func @transform_4(%arg0: i32, %arg1: i32) -> (i32, i32) {
    %c0_i32 = arith.constant 0 : i32
    %c0_i32_0 = arith.constant 0 : i32
    return %arg0, %c0_i32 : i32, i32
  }
}

</mosaic_0001>

<llo_original>
// kernel: tpu_custom_call.1
$region0: #{tpu_custom_call.1}
  #allocation0 [shape = 'u32[]', space=smem, size = 0x4, offset = 0x4, fixed_abs, tag = 'smem constant byte address 0x4 - core index']
  #allocation1 [shape = 'u32[144,128]{1,0:T(1,128)}', space=vmem, size = 0x12000, scoped, tag = 'internal scratch']
  #allocation2 [shape = 'f32[8,128]{1,0:T(8,128)}', space=vmem, size = 0x1000, scoped, tag = 'scratch operand']
  #allocation3 [shape = 'f32[8,1]{1,0:T(8,128)}', space=vmem, size = 0x1000, scoped, tag = 'scratch operand']
  #allocation4 [shape = 'f32[8,1]{1,0:T(8,128)}', space=vmem, size = 0x1000, scoped, tag = 'scratch operand']
  #allocation5 [shape = 'f32[8,1]{1,0:T(8,128)}', space=vmem, size = 0x1000, scoped, tag = 'scratch operand']
  %s0 = inlined_call_operand.vmem [shape: f32[8,128], index: 0, kind: input, shape index: {}]
  %s1 = inlined_call_operand.hbm [shape: f32[8,128], index: 1, kind: input, shape index: {}]
  %s2 = inlined_call_operand.vmem [shape: s32[8,1], index: 2, kind: input, shape index: {}]
  %s3 = inlined_call_operand.vmem [shape: s32[1,8], index: 3, kind: input, shape index: {}]
  %s4 = inlined_call_operand.vmem [shape: f32[8,1], index: 4, kind: output, shape index: {}]
  %s5 = sld [smem:[#allocation0]]
  $region38: #{tpu_custom_call.1} parent=0
    _
  %s7 = ssub.s32 1, %s5
  %s8 = scalar_select 0, %s7, %s5
  $region1: #{tpu_custom_call.1} parent=0
    #allocation6 [shape = 'u8[4096]{0}', space=vmem, size = 0x1000, scoped, tag = 'input window, operand 1, single buffered']
    #allocation7 [shape = 's32[1]{0}', space=sflag, size = 0x4, scoped, tag = 'scoped memory for tpu_custom_call.1']
    %9 = vsyncpa [#allocation7], 0
    // Predicated region
    $region2: #{tpu_custom_call.1} parent=1 // pred_check
      _
    $region3: #{tpu_custom_call.1} parent=1 // pred_check_branch
      %11 = sbr.rel (0) target = $region5
    $region4: #{tpu_custom_call.1} parent=1 // pred_region
      _
    $region5: #{tpu_custom_call.1} parent=1 // pred_fallthru
      _
    // Predicated region
    $region6: #{tpu_custom_call.1} parent=1 // pred_check
      _
    $region7: #{tpu_custom_call.1} parent=1 // pred_check_branch
      %13 = sbr.rel (0) target = $region9
    $region8: #{tpu_custom_call.1} parent=1 // pred_region
      %s15 = ssub.s32 128, 128
      %16 = vsyncadd [#allocation7], %s15
      %s18 = sshll.u32 [#allocation6], 4
      %s19 = int_to_ptr.vmem [resolvable:$true] %s18
      %21 = dma.hbm_to_vmem [thread:$0]  %s1, 128, %s19, [#allocation7]
    $region9: #{tpu_custom_call.1} parent=1 // pred_fallthru
      _
    // Predicated region
    $region10: #{tpu_custom_call.1} parent=1 // pred_check
      _
    $region11: #{tpu_custom_call.1} parent=1 // pred_check_branch
      %23 = sbr.rel (0) target = $region13
    $region12: #{tpu_custom_call.1} parent=1 // pred_region
      _
    $region13: #{tpu_custom_call.1} parent=1 // pred_fallthru
      _
    // Predicated region
    $region14: #{tpu_custom_call.1} parent=1 // pred_check
      _
    $region15: #{tpu_custom_call.1} parent=1 // pred_check_branch
      %25 = sbr.rel (0) target = $region17
    $region16: #{tpu_custom_call.1} parent=1 // pred_region
      _
    $region17: #{tpu_custom_call.1} parent=1 // pred_fallthru
      _
    // Predicated region
    $region18: #{tpu_custom_call.1} parent=1 // pred_check
      _
    $region19: #{tpu_custom_call.1} parent=1 // pred_check_branch
      %27 = sbr.rel (0) target = $region21
    $region20: #{tpu_custom_call.1} parent=1 // pred_region
      %28 = dma.done [#allocation7], 128
    $region21: #{tpu_custom_call.1} parent=1 // pred_fallthru
      _
    %v29 = vld [vmem:[#allocation6] sm:$0xff]
    %v30 = vmul.f32 %v29, %v29
    %31 = vadd.xlane.f32.xlu0 %v30
    %v32 = vpop.xlane.xlu0 %31
    %v33 = vrsqrt.pop %v32
    %v34 = vmul.f32 %v32, %v33
    %vm35 = vcmp.eq.f32.partialorder %v32, inf
    %v36 = vsel %vm35, %v32, %v34
    %vm37 = vcmp.eq.f32.partialorder %v32, 0.0
    %v38 = vand.u32 %v32, 2147483648
    %v39 = vsel %vm37, %v38, %v36
    %v40 = vmax.f32 %v39, 1e-08
    %v41 = vrcp.pop %v40
    %v42 = vmul.f32 %v29, %v41
    %p43 = scmp.eq.s32.totalorder 0, 0
    // Predicated region
    $region22: #{tpu_custom_call.1} parent=1 // pred_check
      %p44 = pneg %p43
    $region23: #{tpu_custom_call.1} parent=1 // pred_check_branch
      %46 = sbr.rel (%p44) target = $region25
    $region24: #{tpu_custom_call.1} parent=1 // pred_region
      %v47 = vld [vmem:[%s0] sm:$0xff]
      %v48 = vmul.f32 %v47, %v47
      %49 = vadd.xlane.f32.xlu0 %v48
      %v50 = vpop.xlane.xlu0 %49
      %v51 = vrsqrt.pop %v50
      %v52 = vmul.f32 %v50, %v51
      %vm53 = vcmp.eq.f32.partialorder %v50, inf
      %v54 = vsel %vm53, %v50, %v52
      %vm55 = vcmp.eq.f32.partialorder %v50, 0.0
      %v56 = vand.u32 %v50, 2147483648
      %v57 = vsel %vm55, %v56, %v54
      %v58 = vmax.f32 %v57, 1e-08
      %v59 = vrcp.pop %v58
      %v60 = vmul.f32 %v47, %v59
      %61 = vst [vmem:[#allocation2] sm:$0xff] %v60
      %v62 = vmul.f32 %v60, %v60
      %63 = vadd.xlane.f32.xlu0 %v62
      %v64 = vpop.xlane.xlu0 %63
      %v65 = vmul.f32 %v64, 10.0
      %v66 = vmul.f32 %v65, 1.442695
      %v67 = vpow.pop %v66
      %v68 = vsub.f32 0.0, %v67
      %vm69 = vcmask 7168
      %70 = vst.msk [vmem:[#allocation3] sm:$0xff] %vm69, %v68
      %71 = vst.msk [vmem:[#allocation4] sm:$0xff] %vm69, -1.0
      %v72 = vsub.f32 0.0, %v65
      %73 = vst.msk [vmem:[#allocation5] sm:$0xff] %vm69, %v72
    $region25: #{tpu_custom_call.1} parent=1 // pred_fallthru
      _
    %v74 = vld [vmem:[#allocation2] sm:$0xff]
    %75 = vmatprep.subr.mxu0 0.0
    %76 = vmatpush1.xpose.msra.mxu0 %v42
    %77 = vmatprep.subr.mxu0 0.0
    %78 = vmatpush1.xpose.msra.mxu0 0.0
    %79 = vmatprep.subr.mxu0 0.0
    %80 = vmatpush1.xpose.msra.mxu0 0.0
    %81 = vmatprep.subr.mxu0 0.0
    %82 = vmatpush1.xpose.msra.mxu0 0.0
    %83 = vmatprep.subr.mxu0 0.0
    %84 = vmatpush1.xpose.msra.mxu0 0.0
    %85 = vmatprep.subr.mxu0 0.0
    %86 = vmatpush1.xpose.msra.mxu0 0.0
    %87 = vmatprep.subr.mxu0 0.0
    %88 = vmatpush1.xpose.msra.mxu0 0.0
    %89 = vmatprep.subr.mxu0 0.0
    %90 = vmatpush1.xpose.msra.mxu0 0.0
    %91 = vmatprep.subr.mxu0 0.0
    %92 = vmatpush1.xpose.msra.mxu0 0.0
    %93 = vmatprep.subr.mxu0 0.0
    %94 = vmatpush1.xpose.msra.mxu0 0.0
    %95 = vmatprep.subr.mxu0 0.0
    %96 = vmatpush1.xpose.msra.mxu0 0.0
    %97 = vmatprep.subr.mxu0 0.0
    %98 = vmatpush1.xpose.msra.mxu0 0.0
    %99 = vmatprep.subr.mxu0 0.0
    %100 = vmatpush1.xpose.msra.mxu0 0.0
    %101 = vmatprep.subr.mxu0 0.0
    %102 = vmatpush1.xpose.msra.mxu0 0.0
    %103 = vmatprep.subr.mxu0 0.0
    %104 = vmatpush1.xpose.msra.mxu0 0.0
    %105 = vmatprep.subr.mxu0 0.0
    %106 = vmatpush1.xpose.msra.mxu0 0.0
    %107 = vmatprep.subr.mxu0 0.0
    %108 = vmatpush1.xpose.msra.mxu0 0.0
    %109 = vmatprep.subr.mxu0 0.0
    %110 = vmatpush1.xpose.msra.mxu0 0.0
    %111 = vmatprep.subr.mxu0 0.0
    %112 = vmatpush1.xpose.msra.mxu0 0.0
    %113 = vmatprep.subr.mxu0 0.0
    %114 = vmatpush1.xpose.msra.mxu0 0.0
    %115 = vmatprep.subr.mxu0 0.0
    %116 = vmatpush1.xpose.msra.mxu0 0.0
    %117 = vmatprep.subr.mxu0 0.0
    %118 = vmatpush1.xpose.msra.mxu0 0.0
    %119 = vmatprep.subr.mxu0 0.0
    %120 = vmatpush1.xpose.msra.mxu0 0.0
    %121 = vmatprep.subr.mxu0 0.0
    %122 = vmatpush1.xpose.msra.mxu0 0.0
    %123 = vmatprep.subr.mxu0 0.0
    %124 = vmatpush1.xpose.msra.mxu0 0.0
    %125 = vmatprep.subr.mxu0 0.0
    %126 = vmatpush1.xpose.msra.mxu0 0.0
    %127 = vmatprep.subr.mxu0 0.0
    %128 = vmatpush1.xpose.msra.mxu0 0.0
    %129 = vmatprep.subr.mxu0 0.0
    %130 = vmatpush1.xpose.msra.mxu0 0.0
    %131 = vmatprep.subr.mxu0 0.0
    %132 = vmatpush1.xpose.msra.mxu0 0.0
    %133 = vmatprep.subr.mxu0 0.0
    %134 = vmatpush1.xpose.msra.mxu0 0.0
    %135 = vmatprep.subr.mxu0 0.0
    %136 = vmatpush1.xpose.msra.mxu0 0.0
    %137 = vmatprep.subr.mxu0 0.0
    %138 = vmatpush1.xpose.msra.mxu0 0.0
    %139 = vmatprep.mubr.f32.mxu0 0.0
    %140 = vmatmul.mubr.f32.gmra.mrb[0].mxu0 %v74
    %v141 = vpop.f32.mrb[0].mxu0
    %v142 = vadd.f32 0.0, %v141
    %v143 = vpop.f32.mrb[0].mxu0
    %144 = vdwg.mxu0
    %v145 = vmul.f32 %v142, 10.0
    %v146 = vmul.f32 %v145, 1.442695
    %v147 = vpow.pop %v146
    %v148 = vld [vmem:[%s2] sm:$0xff]
    %v149 = vld [vmem:[%s3] sm:$0x1]
    %150 = vset.pattern.permute.xlu0 0
    %151 = vperm.xlu0 %150, %v148
    %v152 = vpop.permute.xlu0 %151
    %v153 = vlaneseq
    %v154 = vshrl.u32 %v153, 7
    %v155 = vsub.s32 0, %v154
    %v156 = vrot.slane %v149, %v155
    %vm157 = vcmp.eq.s32.totalorder %v152, %v156
    %v158 = vsel %vm157, 1, 0
    %v159 = vcvt.s32.f32 %v158
    %v160 = vld [vmem:[#allocation3] sm:$0xff]
    %vm161 = vcmask 64512
    %v162 = vsel %vm161, %v147, 0.0
    %163 = vadd.xlane.f32.xlu0 %v162
    %v164 = vpop.xlane.xlu0 %163
    %v165 = vadd.f32 %v160, %v164
    %vm166 = vcmask 7168
    %167 = vst.msk [vmem:[#allocation3] sm:$0xff] %vm166, %v165
    %v168 = vld [vmem:[#allocation4] sm:$0xff]
    %v169 = vsel %vm161, %v159, 0.0
    %170 = vadd.xlane.f32.xlu0 %v169
    %v171 = vpop.xlane.xlu0 %170
    %v172 = vadd.f32 %v168, %v171
    %173 = vst.msk [vmem:[#allocation4] sm:$0xff] %vm166, %v172
    %v174 = vld [vmem:[#allocation5] sm:$0xff]
    %v175 = vmul.f32 %v159, %v145
    %v176 = vsel %vm161, %v175, 0.0
    %177 = vadd.xlane.f32.xlu0 %v176
    %v178 = vpop.xlane.xlu0 %177
    %v179 = vadd.f32 %v174, %v178
    %180 = vst.msk [vmem:[#allocation5] sm:$0xff] %vm166, %v179
    // Predicated region
    $region26: #{tpu_custom_call.1} parent=1 // pred_check
      %p181 = pneg %p43
    $region27: #{tpu_custom_call.1} parent=1 // pred_check_branch
      %183 = sbr.rel (%p181) target = $region29
    $region28: #{tpu_custom_call.1} parent=1 // pred_region
      %v184 = vld [vmem:[#allocation4] sm:$0xff]
      %v185 = vld [vmem:[#allocation5] sm:$0xff]
      %v186 = vld [vmem:[#allocation3] sm:$0xff]
      %v187 = vlog2.pop %v186
      %v188 = vmul.f32 %v187, 0.6931472
      %v189 = vmul.f32 %v184, %v188
      %v190 = vsub.f32 %v189, %v185
      %191 = vst.msk [vmem:[%s4] sm:$0xff] %vm166, %v190
    $region29: #{tpu_custom_call.1} parent=1 // pred_fallthru
      _
    // Predicated region
    $region30: #{tpu_custom_call.1} parent=1 // pred_check
      _
    $region31: #{tpu_custom_call.1} parent=1 // pred_check_branch
      %193 = sbr.rel (0) target = $region33
    $region32: #{tpu_custom_call.1} parent=1 // pred_region
      _
    $region33: #{tpu_custom_call.1} parent=1 // pred_fallthru
      _
    // Predicated region
    $region34: #{tpu_custom_call.1} parent=1 // pred_check
      _
    $region35: #{tpu_custom_call.1} parent=1 // pred_check_branch
      %195 = sbr.rel (0) target = $region37
    $region36: #{tpu_custom_call.1} parent=1 // pred_region
      _
    $region37: #{tpu_custom_call.1} parent=1 // pred_fallthru
      _
    %196 = vsyncpa [#allocation7], 1

</llo_original>
